<compile_context>
chip_gen: v6e
topology: v6e:2x2x1
jax: 0.10.0
libtpu: 0.0.40
codegen_flags: <defaults>
</compile_context>

<pallas_src>
import functools

import jax
import jax.numpy as jnp
import numpy as np
from jax.experimental import pallas as pl
from jax.experimental.pallas import tpu as pltpu


def _batch_dist_kernel(x_ref, c_ref, out_ref, acc_ref, *, batch, tb):
    """Accumulate sum_i clip(||x_i - c_{y_i}||^2, 1e-12, 1e12); emit clipped mean."""
    i = pl.program_id(0)

    @pl.when(i == 0)
    def _init():
        acc_ref[0, 0] = 0.0

    x = x_ref[...].astype(jnp.float32)                    # (tb, D)
    c = c_ref[...].astype(jnp.float32)                    # (tb, D)
    d = x - c
    dist = jnp.sum(d * d, axis=-1, keepdims=True)         # (tb, 1)
    dist = jnp.clip(dist, 1e-12, 1e12)

    if batch % tb != 0:
        # Mask rows of the padded last tile (OOB reads are unspecified).
        row = i * tb + jax.lax.broadcasted_iota(jnp.int32, (tb, 1), 0)
        dist = jnp.where(row < batch, dist, 0.0)

    acc_ref[0, 0] += jnp.sum(dist)

    @pl.when(i == pl.num_programs(0) - 1)
    def _finalize():
        out_ref[0, 0] = jnp.clip(acc_ref[0, 0] * (1.0 / batch), 1e-6, 100.0)


def _gram_hinge_kernel(cr_ref, cc_ref, out_ref, acc_ref, *,
                       cos_th, num_classes, tc):
    """loss_inner = sum_{i<j} relu(10*(<n_i,n_j> - cos_th)).

    Computed as 0.5 * (sum_{ij} H_ij - sum_i H_ii) over (tc, tc) gram tiles;
    the diagonal hinge is derived from the squared norms (not assumed 1.0).
    """
    bi = pl.program_id(0)
    bj = pl.program_id(1)

    @pl.when(jnp.logical_and(bi == 0, bj == 0))
    def _init():
        acc_ref[0, 0] = 0.0

    cr = cr_ref[...].astype(jnp.float32)                  # (tc, D) row block
    cc = cc_ref[...].astype(jnp.float32)                  # (tc, D) col block
    csq_r = jnp.sum(cr * cr, axis=1, keepdims=True)       # (tc, 1)
    csq_c = jnp.sum(cc * cc, axis=1, keepdims=True)
    # F.normalize: x / max(||x||, 1e-12) == x * rsqrt(max(||x||^2, 1e-24))
    inv_r = jax.lax.rsqrt(jnp.maximum(csq_r, 1e-24))
    inv_c = jax.lax.rsqrt(jnp.maximum(csq_c, 1e-24))
    cnr = cr * inv_r
    cnc = cc * inv_c

    # MXU gram block without an explicit transpose relayout.
    gram = jax.lax.dot_general(cnr, cnc, (((1,), (1,)), ((), ())),
                               preferred_element_type=jnp.float32)  # (tc, tc)
    hinge = jnp.maximum(10.0 * (gram - cos_th), 0.0)

    need_mask = (num_classes % tc) != 0
    if need_mask:
        row = bi * tc + jax.lax.broadcasted_iota(jnp.int32, (tc, 1), 0)
        col = bj * tc + jax.lax.broadcasted_iota(jnp.int32, (1, tc), 1)
        hinge = jnp.where(
            jnp.logical_and(row < num_classes, col < num_classes), hinge, 0.0)

    acc_ref[0, 0] += jnp.sum(hinge)

    @pl.when(bi == bj)
    def _subtract_diag():
        g_diag = csq_r * inv_r * inv_r                    # (tc, 1): gram_ii
        dh = jnp.maximum(10.0 * (g_diag - cos_th), 0.0)
        if need_mask:
            row = bi * tc + jax.lax.broadcasted_iota(jnp.int32, (tc, 1), 0)
            dh = jnp.where(row < num_classes, dh, 0.0)
        acc_ref[0, 0] -= jnp.sum(dh)

    @pl.when(jnp.logical_and(bi == pl.num_programs(0) - 1,
                             bj == pl.num_programs(1) - 1))
    def _finalize():
        out_ref[0, 0] = 0.5 * acc_ref[0, 0]


def _pick_rows(n, d, max_rows, budget_bytes):
    """Row tile: full extent if it fits, else a multiple of 8 under the VMEM budget."""
    cap = budget_bytes // max(4 * d, 4)
    cap = min(max_rows, cap)
    cap = max(8, (cap // 8) * 8)
    return n if n <= cap else cap


def center_loss(x, labels, centers, num_classes):
    """x: (B, D) f32, labels: (B,) int, centers: (C, D) f32 -> scalar loss."""
    B, D = x.shape
    C = centers.shape[0]
    cos_th = float(np.cos(0.9 * 2.0 * np.pi / num_classes))

    labels = labels.astype(jnp.int32)
    c_sel = jnp.take(centers, labels, axis=0)             # (B, D) wrapper gather

    # ---- batch distance term (streaming, mem-bound reduce) -------------------
    tb = _pick_rows(B, D, max_rows=512, budget_bytes=2 * 1024 * 1024)
    nb = pl.cdiv(B, tb)
    batch_kernel = functools.partial(_batch_dist_kernel, batch=B, tb=tb)
    loss_b = pl.pallas_call(
        batch_kernel,
        out_shape=jax.ShapeDtypeStruct((1, 1), jnp.float32),
        grid_spec=pltpu.PrefetchScalarGridSpec(
            num_scalar_prefetch=0,
            grid=(nb,),
            in_specs=[
                pl.BlockSpec((tb, D), lambda i: (i, 0)),   # x tile
                pl.BlockSpec((tb, D), lambda i: (i, 0)),   # gathered centers tile
            ],
            out_specs=pl.BlockSpec(memory_space=pltpu.MemorySpace.SMEM),
            scratch_shapes=[pltpu.SMEM((1, 1), jnp.float32)],
        ),
        compiler_params=pltpu.CompilerParams(
            dimension_semantics=("arbitrary",),            # batch axis is a reduction
            vmem_limit_bytes=32 * 1024 * 1024),
    )(x, c_sel)

    # ---- normalized-center gram hinge term (separate tiled kernel) -----------
    tc = _pick_rows(C, D, max_rows=256, budget_bytes=2 * 1024 * 1024)
    ncb = pl.cdiv(C, tc)
    gram_kernel = functools.partial(_gram_hinge_kernel, cos_th=cos_th,
                                    num_classes=C, tc=tc)
    loss_i = pl.pallas_call(
        gram_kernel,
        out_shape=jax.ShapeDtypeStruct((1, 1), jnp.float32),
        grid_spec=pltpu.PrefetchScalarGridSpec(
            num_scalar_prefetch=0,
            grid=(ncb, ncb),
            in_specs=[
                pl.BlockSpec((tc, D), lambda i, j: (i, 0)),   # row block
                pl.BlockSpec((tc, D), lambda i, j: (j, 0)),   # col block
            ],
            out_specs=pl.BlockSpec(memory_space=pltpu.MemorySpace.SMEM),
            scratch_shapes=[pltpu.SMEM((1, 1), jnp.float32)],
        ),
        compiler_params=pltpu.CompilerParams(
            dimension_semantics=("arbitrary", "arbitrary"),
            vmem_limit_bytes=32 * 1024 * 1024),
    )(centers, centers)

    return loss_b[0, 0] + loss_i[0, 0]


def center_loss_ref(x, labels, centers, num_classes):
    """Pure-JAX reference mirroring the PyTorch forward."""
    cos_th = float(np.cos(0.9 * 2.0 * np.pi / num_classes))
    B = x.shape[0]
    distmat = (
        jnp.sum(x * x, axis=1, keepdims=True)
        + jnp.sum(centers * centers, axis=1, keepdims=True).T
        - 2.0 * x @ centers.T
    )
    sel = distmat[jnp.arange(B), labels]
    loss = jnp.clip(jnp.mean(jnp.clip(sel, 1e-12, 1e12)), 1e-6, 100.0)
    cn = centers / jnp.maximum(
        jnp.linalg.norm(centers, axis=1, keepdims=True), 1e-12)
    gram = cn @ cn.T
    iu = np.triu_indices(num_classes, 1)
    loss_inner = jnp.sum(jax.nn.relu(10.0 * (gram[iu] - cos_th)))
    return loss + loss_inner


if __name__ == "__main__":
    num_classes = 10
    feat_dim = 32
    batch = 8

    key = jax.random.PRNGKey(0)
    kx, kl, kc = jax.random.split(key, 3)
    x = jax.random.normal(kx, (batch, feat_dim), dtype=jnp.float32)
    labels = jax.random.randint(kl, (batch,), 0, num_classes, dtype=jnp.int32)
    # deterministic synthetic init for the `centers` parameter (~ torch.randn)
    centers = jax.random.normal(kc, (num_classes, feat_dim), dtype=jnp.float32)

    out = center_loss(x, labels, centers, num_classes)
    out = jax.block_until_ready(out)

    ref = center_loss_ref(x, labels, centers, num_classes)
    assert np.allclose(np.asarray(out), np.asarray(ref), rtol=1e-5, atol=1e-4), (
        out, ref)

    print("KERNEL_OK")
</pallas_src>

<mosaic_0001>
module attributes {stable_mosaic.version = 11 : i64} {
  func.func @_batch_dist_kernel(%arg0: i32, %arg1: memref<8x32xf32, #tpu.memory_space<vmem>>, %arg2: memref<8x32xf32, #tpu.memory_space<vmem>>, %arg3: memref<1x1xf32, #tpu.memory_space<smem>>, %arg4: memref<1x1xf32, #tpu.memory_space<smem>>) attributes {dimension_semantics = [#tpu.dimension_semantics<arbitrary>], iteration_bounds = array<i64: 1>, scalar_prefetch = 0 : i64, scratch_operands = 1 : i64, tpu.core_type = #tpu.core_type<tc>, window_params = [{transform_indices = @transform_0, window_bounds = array<i64: 8, 32>}, {transform_indices = @transform_1, window_bounds = array<i64: 8, 32>}, {transform_indices = @transform_2, window_bounds = array<i64: 1, 1>}]} {
    %c0_i32 = arith.constant 0 : i32
    %0 = arith.cmpi eq, %arg0, %c0_i32 : i32
    %1 = arith.extui %0 : i1 to i32
    %c0_i32_0 = arith.constant 0 : i32
    %2 = arith.cmpi ne, %1, %c0_i32_0 : i32
    scf.if %2 {
      %cst_13 = arith.constant 0.000000e+00 : f32
      %c0_14 = arith.constant 0 : index
      %c0_15 = arith.constant 0 : index
      %23 = memref.load %arg4[%c0_14, %c0_15] : memref<1x1xf32, #tpu.memory_space<smem>>
      memref.store %cst_13, %arg4[%c0_14, %c0_15] : memref<1x1xf32, #tpu.memory_space<smem>>
    } else {
    }
    %c0 = arith.constant 0 : index
    %c0_1 = arith.constant 0 : index
    %3 = vector.load %arg1[%c0, %c0_1] : memref<8x32xf32, #tpu.memory_space<vmem>>, vector<8x32xf32>
    %c0_2 = arith.constant 0 : index
    %c0_3 = arith.constant 0 : index
    %4 = vector.load %arg2[%c0_2, %c0_3] : memref<8x32xf32, #tpu.memory_space<vmem>>, vector<8x32xf32>
    %5 = arith.subf %3, %4 : vector<8x32xf32>
    %6 = arith.mulf %5, %5 : vector<8x32xf32>
    %cst = arith.constant dense<0.000000e+00> : vector<8xf32>
    %7 = vector.multi_reduction <add>, %6, %cst [1] : vector<8x32xf32> to vector<8xf32>
    %8 = vector.shape_cast %7 : vector<8xf32> to vector<8x1xf32>
    %cst_4 = arith.constant 9.99999996E-13 : f32
    %cst_5 = arith.constant 9.99999995E+11 : f32
    %9 = vector.broadcast %cst_4 : f32 to vector<8x1xf32>
    %10 = arith.maximumf %9, %8 : vector<8x1xf32>
    %11 = vector.broadcast %cst_5 : f32 to vector<8x1xf32>
    %12 = arith.minimumf %11, %10 : vector<8x1xf32>
    %c0_6 = arith.constant 0 : index
    %c0_7 = arith.constant 0 : index
    %13 = memref.load %arg4[%c0_6, %c0_7] : memref<1x1xf32, #tpu.memory_space<smem>>
    %14 = vector.shape_cast %12 : vector<8x1xf32> to vector<1x8x1xf32>
    %cst_8 = arith.constant dense<0.000000e+00> : vector<1xf32>
    %15 = vector.multi_reduction <add>, %14, %cst_8 [1, 2] : vector<1x8x1xf32> to vector<1xf32>
    %16 = vector.shape_cast %15 : vector<1xf32> to vector<1x1x1xf32>
    %17 = vector.extract %16[0, 0, 0] : f32 from vector<1x1x1xf32>
    %18 = arith.addf %13, %17 : f32
    %c0_9 = arith.constant 0 : index
    %c0_10 = arith.constant 0 : index
    %19 = memref.load %arg4[%c0_9, %c0_10] : memref<1x1xf32, #tpu.memory_space<smem>>
    memref.store %18, %arg4[%c0_9, %c0_10] : memref<1x1xf32, #tpu.memory_space<smem>>
    %c0_i32_11 = arith.constant 0 : i32
    %20 = arith.cmpi eq, %arg0, %c0_i32_11 : i32
    %21 = arith.extui %20 : i1 to i32
    %c0_i32_12 = arith.constant 0 : i32
    %22 = arith.cmpi ne, %21, %c0_i32_12 : i32
    scf.if %22 {
      %c0_13 = arith.constant 0 : index
      %c0_14 = arith.constant 0 : index
      %23 = memref.load %arg4[%c0_13, %c0_14] : memref<1x1xf32, #tpu.memory_space<smem>>
      %cst_15 = arith.constant 1.250000e-01 : f32
      %24 = arith.mulf %23, %cst_15 : f32
      %cst_16 = arith.constant 9.99999997E-7 : f32
      %cst_17 = arith.constant 1.000000e+02 : f32
      %25 = arith.maximumf %cst_16, %24 : f32
      %26 = arith.minimumf %cst_17, %25 : f32
      %c0_18 = arith.constant 0 : index
      %c0_19 = arith.constant 0 : index
      %27 = memref.load %arg3[%c0_18, %c0_19] : memref<1x1xf32, #tpu.memory_space<smem>>
      memref.store %26, %arg3[%c0_18, %c0_19] : memref<1x1xf32, #tpu.memory_space<smem>>
    } else {
    }
    return
  }
  func.func @transform_0(%arg0: i32) -> (i32, i32) {
    %c0_i32 = arith.constant 0 : i32
    %c0_i32_0 = arith.constant 0 : i32
    return %arg0, %c0_i32 : i32, i32
  }
  func.func @transform_1(%arg0: i32) -> (i32, i32) {
    %c0_i32 = arith.constant 0 : i32
    %c0_i32_0 = arith.constant 0 : i32
    return %arg0, %c0_i32 : i32, i32
  }
  func.func @transform_2(%arg0: i32) -> (i32, i32) {
    %c0_i32 = arith.constant 0 : i32
    %c0_i32_0 = arith.constant 0 : i32
    %c0_i32_1 = arith.constant 0 : i32
    return %c0_i32, %c0_i32_0 : i32, i32
  }
}

</mosaic_0001>

<llo_original>
// kernel: tpu_custom_call.1
$region0: #{tpu_custom_call.1}
  #allocation0 [shape = 'u32[]', space=smem, size = 0x4, offset = 0x4, fixed_abs, tag = 'smem constant byte address 0x4 - core index']
  #allocation1 [shape = 'u32[144,128]{1,0:T(1,128)}', space=vmem, size = 0x12000, scoped, tag = 'internal scratch']
  #allocation2 [shape = 'f32[1,1]{1,0:T(1,128)}', space=smem, size = 0x200, scoped, tag = 'scratch operand']
  %s0 = inlined_call_operand.hbm [shape: f32[8,32], index: 0, kind: input, shape index: {}]
  %s1 = inlined_call_operand.hbm [shape: f32[8,32], index: 1, kind: input, shape index: {}]
  %s2 = inlined_call_operand.hbm [shape: f32[1,1], index: 2, kind: output, shape index: {}]
  %s3 = sld [smem:[#allocation0]]
  $region34: #{tpu_custom_call.1} parent=0
    _
  %s5 = ssub.s32 1, %s3
  %s6 = scalar_select 0, %s5, %s3
  $region1: #{tpu_custom_call.1} parent=0
    #allocation3 [shape = 'u8[4096]{0}', space=vmem, size = 0x1000, scoped, tag = 'input window, operand 0, single buffered']
    #allocation4 [shape = 's32[1]{0}', space=sflag, size = 0x4, scoped, tag = 'scoped memory for tpu_custom_call.1']
    #allocation5 [shape = 's32[1]{0}', space=sflag, size = 0x4, scoped, tag = 'scoped memory for tpu_custom_call.1']
    #allocation6 [shape = 'u8[4096]{0}', space=vmem, size = 0x1000, scoped, tag = 'input window, operand 1, single buffered']
    #allocation7 [shape = 's32[1]{0}', space=sflag, size = 0x4, scoped, tag = 'scoped memory for tpu_custom_call.1']
    #allocation8 [shape = 'u8[512]{0}', space=smem, size = 0x200, scoped, tag = 'output window, operand 0, single buffered']
    %7 = vsyncpa [#allocation4], 0
    %8 = vsyncpa [#allocation7], 0
    %9 = vsyncpa [#allocation5], 0
    // Predicated region
    $region2: #{tpu_custom_call.1} parent=1 // pred_check
      _
    $region3: #{tpu_custom_call.1} parent=1 // pred_check_branch
      %11 = sbr.rel (0) target = $region5
    $region4: #{tpu_custom_call.1} parent=1 // pred_region
      %s13 = ssub.s32 128, 128
      %14 = vsyncadd [#allocation4], %s13
      %s16 = sshll.u32 [#allocation3], 4
      %s17 = int_to_ptr.vmem [resolvable:$true] %s16
      %19 = dma.hbm_to_vmem [thread:$0]  %s0, 128, %s17, [#allocation4]
    $region5: #{tpu_custom_call.1} parent=1 // pred_fallthru
      _
    // Predicated region
    $region6: #{tpu_custom_call.1} parent=1 // pred_check
      _
    $region7: #{tpu_custom_call.1} parent=1 // pred_check_branch
      %21 = sbr.rel (0) target = $region9
    $region8: #{tpu_custom_call.1} parent=1 // pred_region
      %s23 = ssub.s32 128, 128
      %24 = vsyncadd [#allocation7], %s23
      %s26 = sshll.u32 [#allocation6], 4
      %s27 = int_to_ptr.vmem [resolvable:$true] %s26
      %29 = dma.hbm_to_vmem [thread:$0]  %s1, 128, %s27, [#allocation7]
    $region9: #{tpu_custom_call.1} parent=1 // pred_fallthru
      _
    // Predicated region
    $region10: #{tpu_custom_call.1} parent=1 // pred_check
      _
    $region11: #{tpu_custom_call.1} parent=1 // pred_check_branch
      %31 = sbr.rel (0) target = $region13
    $region12: #{tpu_custom_call.1} parent=1 // pred_region
      %32 = dma.done [#allocation4], 128
    $region13: #{tpu_custom_call.1} parent=1 // pred_fallthru
      _
    // Predicated region
    $region14: #{tpu_custom_call.1} parent=1 // pred_check
      _
    $region15: #{tpu_custom_call.1} parent=1 // pred_check_branch
      %34 = sbr.rel (0) target = $region17
    $region16: #{tpu_custom_call.1} parent=1 // pred_region
      %35 = dma.done [#allocation7], 128
    $region17: #{tpu_custom_call.1} parent=1 // pred_fallthru
      _
    %p36 = scmp.eq.s32.totalorder 0, 0
    // Predicated region
    $region18: #{tpu_custom_call.1} parent=1 // pred_check
      %p37 = pneg %p36
    $region19: #{tpu_custom_call.1} parent=1 // pred_check_branch
      %39 = sbr.rel (%p37) target = $region21
    $region20: #{tpu_custom_call.1} parent=1 // pred_region
      %s40 = scalar_lea.smem [#allocation2], 0
      %41 = sst [smem:[%s40]] 0.0
    $region21: #{tpu_custom_call.1} parent=1 // pred_fallthru
      _
    %v42 = vld [vmem:[#allocation3] sm:$0xff]
    %v43 = vld [vmem:[#allocation6] sm:$0xff]
    %v44 = vsub.f32 %v42, %v43
    %v45 = vmul.f32 %v44, %v44
    %vm46 = vcmask 261120
    %v47 = vsel %vm46, %v45, 0.0
    %48 = vadd.xlane.f32.xlu0 %v47
    %v49 = vpop.xlane.xlu0 %48
    %v50 = vmax.f32 %v49, 1e-12
    %v51 = vmin.f32 %v50, 1e+12
    %s52 = sld [smem:[#allocation2]]
    %vm53 = vcmask 7168
    %v54 = vsel %vm53, %v51, 0.0
    %55 = vadd.xlane.f32.xlu0 %v54
    %v56 = vpop.xlane.xlu0 %55
    %v57 = vrot.slane %v56, 4
    %v58 = vadd.f32 %v56, %v57
    %v59 = vrot.slane %v58, 2
    %v60 = vadd.f32 %v58, %v59
    %v61 = vrot.slane %v60, 1
    %v62 = vadd.f32 %v60, %v61
    %s63 = vtos %v62
    %s64 = sadd.f32 %s52, %s63
    %s65 = scalar_lea.smem [#allocation2], 0
    %66 = sst [smem:[%s65]] %s64
    // Predicated region
    $region22: #{tpu_custom_call.1} parent=1 // pred_check
      %p67 = pneg %p36
    $region23: #{tpu_custom_call.1} parent=1 // pred_check_branch
      %69 = sbr.rel (%p67) target = $region25
    $region24: #{tpu_custom_call.1} parent=1 // pred_region
      %s70 = sld [smem:[#allocation2]]
      %s71 = smul.f32 %s70, 0.125
      %s72 = smax.f32 %s71, 1e-06
      %s73 = smin.f32 %s72, 100.0
      %s74 = scalar_lea.smem [#allocation8], 0
      %75 = sst [smem:[%s74]] %s73
    $region25: #{tpu_custom_call.1} parent=1 // pred_fallthru
      _
    // Predicated region
    $region26: #{tpu_custom_call.1} parent=1 // pred_check
      _
    $region27: #{tpu_custom_call.1} parent=1 // pred_check_branch
      %77 = sbr.rel (0) target = $region29
    $region28: #{tpu_custom_call.1} parent=1 // pred_region
      %s79 = ssub.s32 16, 16
      %80 = vsyncadd [#allocation5], %s79
      %83 = dma.smem_to_hbm [#allocation8], 16, %s2, [#allocation5]
    $region29: #{tpu_custom_call.1} parent=1 // pred_fallthru
      _
    // Predicated region
    $region30: #{tpu_custom_call.1} parent=1 // pred_check
      _
    $region31: #{tpu_custom_call.1} parent=1 // pred_check_branch
      %85 = sbr.rel (0) target = $region33
    $region32: #{tpu_custom_call.1} parent=1 // pred_region
      %86 = dma.done [#allocation5], 16
    $region33: #{tpu_custom_call.1} parent=1 // pred_fallthru
      _
    %87 = sfence
    %88 = vsyncpa [#allocation4], 1
    %89 = vsyncpa [#allocation7], 1
    %90 = vsyncpa [#allocation5], 1

</llo_original>
